<compile_context>
chip_gen: v7x
topology: tpu7x:2x2x1
jax: 0.10.0
libtpu: 0.0.40
codegen_flags: <defaults>
</compile_context>

<pallas_src>
import jax
import jax.numpy as jnp
from jax.experimental import pallas as pl
from jax.experimental.pallas import tpu as pltpu


def _tv_kernel(x_ref, o_ref):
    # x_ref / o_ref: (g, H, W) block of whole image planes.
    g, H, W = x_ref.shape
    inv9 = jnp.float32(1.0 / 9.0)

    # Edge masks, built once and reused across the (small) unrolled plane loop.
    row = jax.lax.broadcasted_iota(jnp.int32, (H, W), 0)
    col = jax.lax.broadcasted_iota(jnp.int32, (H, W), 1)
    not_last_row = row < (H - 1)
    not_first_row = row > 0
    not_last_col = col < (W - 1)
    not_first_col = col > 0

    # In-register shifts with zero fill at the image border.  Circular roll
    # runs on the XLU (separate bundle slot from the VPU), the edge mask is a
    # cheap select; no VMEM traffic at all.
    def up(a):      # up(a)[i, j]    = a[i + 1, j],  last row    -> 0
        return jnp.where(not_last_row, pltpu.roll(a, shift=H - 1, axis=0), 0.0)

    def down(a):    # down(a)[i, j]  = a[i - 1, j],  first row   -> 0
        return jnp.where(not_first_row, pltpu.roll(a, shift=1, axis=0), 0.0)

    def left(a):    # left(a)[i, j]  = a[i, j + 1],  last column -> 0
        return jnp.where(not_last_col, pltpu.roll(a, shift=W - 1, axis=1), 0.0)

    def right(a):   # right(a)[i, j] = a[i, j - 1],  first column -> 0
        return jnp.where(not_first_col, pltpu.roll(a, shift=1, axis=1), 0.0)

    # TODO(synk): for very large planes (H*W*4 >> vreg file) strip-mine the
    # rows with a +/-2-row halo (second grid axis) to bound register pressure;
    # unnecessary at the block sizes the wrapper selects here.
    for gi in range(g):
        xv = x_ref[gi].astype(jnp.float32)                       # (H, W)

        # |dy| / |dx| with the zero row / column appended (torch F.pad).
        dy = jnp.where(not_last_row,
                       jnp.abs(pltpu.roll(xv, shift=H - 1, axis=0) - xv), 0.0)
        dx = jnp.where(not_last_col,
                       jnp.abs(pltpu.roll(xv, shift=W - 1, axis=1) - xv), 0.0)

        # Separable zero-padded 3x3 box sums: vertical 3-sum then horizontal.
        vy = down(dy) + dy + up(dy)
        vx = down(dx) + dx + up(dx)
        by = right(vy) + vy + left(vy)
        bx = right(vx) + vx + left(vx)

        # Box outputs are >= 0, so the torch abs() is a no-op; scale once.
        o_ref[gi] = ((by + bx) * inv9).astype(o_ref.dtype)


def tv_extractor(x, tv_loss_weight=1.0):
    """x: (B, 1, H, W). Returns the TV map with the same shape/dtype as x.

    The torch module's fixed (1,1,3,3), groups=1 conv requires C == 1.
    TVLoss_weight is accepted for API parity but, as in the torch forward(),
    never applied.
    """
    B, C, H, W = x.shape
    assert C == 1, "TV_extractor's fixed (1,1,3,3) conv requires C == 1"
    assert H >= 2 and W >= 2, "TV_extractor needs spatial dims >= 2"
    del tv_loss_weight  # stored but unused in the torch forward()

    n_img = B * C
    xf = x.reshape(n_img, H, W)
    out_dtype = x.dtype
    in_itemsize = int(jnp.dtype(x.dtype).itemsize)
    out_itemsize = int(jnp.dtype(out_dtype).itemsize)

    # Generation-aware VMEM budget (v5e/v6e: 128 MiB, v7x: 64 MiB).
    vmem_cap = 64 * 1024 * 1024
    try:
        vmem_cap = int(getattr(pltpu.get_tpu_info(), "vmem_capacity_bytes",
                               vmem_cap))
    except Exception:
        pass

    # Planes per grid step: blocks as large as reasonable for DMA efficiency,
    # but keep >= 2 grid steps whenever possible (both v7x TensorCores get
    # work; costs nothing on single-TC v5e/v6e) and bound the in-kernel unroll.
    plane_f32_bytes = H * W * 4
    target_block_bytes = min(8 * 1024 * 1024, vmem_cap // 8)
    g = 1
    for cand in range(2, min(n_img, 8) + 1):
        if (n_img % cand == 0
                and cand * plane_f32_bytes <= target_block_bytes
                and n_img // cand >= 2):
            g = cand
    grid = (n_img // g,)

    # Double-buffered input + output blocks plus in-register working set,
    # capped well under the physical VMEM of the current generation.
    vmem_need = 2 * g * H * W * (in_itemsize + out_itemsize) + 6 * g * H * W * 4
    vmem_limit = int(min(max(2 * vmem_need, 16 * 1024 * 1024),
                         (vmem_cap * 3) // 4))

    cost = pl.CostEstimate(
        flops=int(25 * n_img * H * W),
        transcendentals=0,
        bytes_accessed=int(n_img * H * W * (in_itemsize + out_itemsize)),
    )

    out = pl.pallas_call(
        _tv_kernel,
        out_shape=jax.ShapeDtypeStruct((n_img, H, W), out_dtype),
        grid_spec=pltpu.PrefetchScalarGridSpec(
            num_scalar_prefetch=0,
            grid=grid,
            in_specs=[pl.BlockSpec((g, H, W), lambda i: (i, 0, 0))],
            out_specs=pl.BlockSpec((g, H, W), lambda i: (i, 0, 0)),
        ),
        compiler_params=pltpu.CompilerParams(
            dimension_semantics=("parallel",),
            vmem_limit_bytes=vmem_limit,
        ),
        cost_estimate=cost,
    )(xf)
    return out.reshape(B, C, H, W)


def _reference(x):
    """Pure-JAX mirror of the torch forward (for verification only)."""
    xf = x.astype(jnp.float32)
    h_tv = jnp.abs(xf[:, :, 1:, :] - xf[:, :, :-1, :])
    w_tv = jnp.abs(xf[:, :, :, 1:] - xf[:, :, :, :-1])
    h_tv = jnp.pad(h_tv, ((0, 0), (0, 0), (0, 1), (0, 0)))
    w_tv = jnp.pad(w_tv, ((0, 0), (0, 0), (0, 0), (0, 1)))
    fil = jnp.ones((1, 1, 3, 3), jnp.float32) / 9.0

    def conv(y):
        return jax.lax.conv_general_dilated(
            y, fil, window_strides=(1, 1), padding=((1, 1), (1, 1)),
            dimension_numbers=("NCHW", "OIHW", "NCHW"))

    return (jnp.abs(conv(h_tv)) + jnp.abs(conv(w_tv))).astype(x.dtype)


if __name__ == "__main__":
    key = jax.random.PRNGKey(0)
    # The module's fixed conv filter has a single input channel, so C == 1.
    x = jax.random.normal(key, (2, 1, 16, 16), dtype=jnp.float32)

    out = tv_extractor(x)
    out = jax.block_until_ready(out)
    ref = _reference(x)

    if out.shape == ref.shape and bool(
            jnp.allclose(out, ref, rtol=1e-5, atol=1e-5)):
        print("KERNEL_OK")
    else:
        err = jnp.max(jnp.abs(out.astype(jnp.float32) - ref.astype(jnp.float32)))
        print(f"MISMATCH: max abs err = {err}")
</pallas_src>

<mosaic_0001>
module attributes {stable_mosaic.version = 11 : i64} {
  func.func @_tv_kernel(%arg0: i32, %arg1: memref<1x16x16xf32, #tpu.memory_space<vmem>>, %arg2: memref<1x16x16xf32, #tpu.memory_space<vmem>>) attributes {dimension_semantics = [#tpu.dimension_semantics<parallel>], iteration_bounds = array<i64: 2>, scalar_prefetch = 0 : i64, scratch_operands = 0 : i64, tpu.core_type = #tpu.core_type<tc>, window_params = [{transform_indices = @transform_0, window_bounds = array<i64: 1, 16, 16>}, {transform_indices = @transform_1, window_bounds = array<i64: 1, 16, 16>}]} {
    %0 = tpu.iota {dimensions = array<i32: 0>} : vector<16x16xi32>
    %1 = tpu.iota {dimensions = array<i32: 1>} : vector<16x16xi32>
    %c15_i32 = arith.constant 15 : i32
    %2 = vector.broadcast %c15_i32 : i32 to vector<16x16xi32>
    %3 = arith.cmpi slt, %0, %2 : vector<16x16xi32>
    %c0_i32 = arith.constant 0 : i32
    %4 = vector.broadcast %c0_i32 : i32 to vector<16x16xi32>
    %5 = arith.cmpi sgt, %0, %4 : vector<16x16xi32>
    %c15_i32_0 = arith.constant 15 : i32
    %6 = vector.broadcast %c15_i32_0 : i32 to vector<16x16xi32>
    %7 = arith.cmpi slt, %1, %6 : vector<16x16xi32>
    %c0_i32_1 = arith.constant 0 : i32
    %8 = vector.broadcast %c0_i32_1 : i32 to vector<16x16xi32>
    %9 = arith.cmpi sgt, %1, %8 : vector<16x16xi32>
    %c0 = arith.constant 0 : index
    %c0_2 = arith.constant 0 : index
    %c0_3 = arith.constant 0 : index
    %10 = vector.load %arg1[%c0, %c0_2, %c0_3] : memref<1x16x16xf32, #tpu.memory_space<vmem>>, vector<1x16x16xf32>
    %11 = vector.shape_cast %10 : vector<1x16x16xf32> to vector<16x16xf32>
    %c15_i32_4 = arith.constant 15 : i32
    %12 = tpu.dynamic_rotate %11 by %c15_i32_4 dim 0 : vector<16x16xf32>, i32 -> vector<16x16xf32>
    %13 = arith.subf %12, %11 : vector<16x16xf32>
    %14 = math.absf %13 : vector<16x16xf32>
    %cst = arith.constant 0.000000e+00 : f32
    %15 = vector.broadcast %cst : f32 to vector<16x16xf32>
    %16 = arith.select %3, %14, %15 : vector<16x16xi1>, vector<16x16xf32>
    %c15_i32_5 = arith.constant 15 : i32
    %17 = tpu.dynamic_rotate %11 by %c15_i32_5 dim 1 : vector<16x16xf32>, i32 -> vector<16x16xf32>
    %18 = arith.subf %17, %11 : vector<16x16xf32>
    %19 = math.absf %18 : vector<16x16xf32>
    %cst_6 = arith.constant 0.000000e+00 : f32
    %20 = vector.broadcast %cst_6 : f32 to vector<16x16xf32>
    %21 = arith.select %7, %19, %20 : vector<16x16xi1>, vector<16x16xf32>
    %c1_i32 = arith.constant 1 : i32
    %22 = tpu.dynamic_rotate %16 by %c1_i32 dim 0 : vector<16x16xf32>, i32 -> vector<16x16xf32>
    %cst_7 = arith.constant 0.000000e+00 : f32
    %23 = vector.broadcast %cst_7 : f32 to vector<16x16xf32>
    %24 = arith.select %5, %22, %23 : vector<16x16xi1>, vector<16x16xf32>
    %25 = arith.addf %24, %16 : vector<16x16xf32>
    %c15_i32_8 = arith.constant 15 : i32
    %26 = tpu.dynamic_rotate %16 by %c15_i32_8 dim 0 : vector<16x16xf32>, i32 -> vector<16x16xf32>
    %cst_9 = arith.constant 0.000000e+00 : f32
    %27 = vector.broadcast %cst_9 : f32 to vector<16x16xf32>
    %28 = arith.select %3, %26, %27 : vector<16x16xi1>, vector<16x16xf32>
    %29 = arith.addf %25, %28 : vector<16x16xf32>
    %c1_i32_10 = arith.constant 1 : i32
    %30 = tpu.dynamic_rotate %21 by %c1_i32_10 dim 0 : vector<16x16xf32>, i32 -> vector<16x16xf32>
    %cst_11 = arith.constant 0.000000e+00 : f32
    %31 = vector.broadcast %cst_11 : f32 to vector<16x16xf32>
    %32 = arith.select %5, %30, %31 : vector<16x16xi1>, vector<16x16xf32>
    %33 = arith.addf %32, %21 : vector<16x16xf32>
    %c15_i32_12 = arith.constant 15 : i32
    %34 = tpu.dynamic_rotate %21 by %c15_i32_12 dim 0 : vector<16x16xf32>, i32 -> vector<16x16xf32>
    %cst_13 = arith.constant 0.000000e+00 : f32
    %35 = vector.broadcast %cst_13 : f32 to vector<16x16xf32>
    %36 = arith.select %3, %34, %35 : vector<16x16xi1>, vector<16x16xf32>
    %37 = arith.addf %33, %36 : vector<16x16xf32>
    %c1_i32_14 = arith.constant 1 : i32
    %38 = tpu.dynamic_rotate %29 by %c1_i32_14 dim 1 : vector<16x16xf32>, i32 -> vector<16x16xf32>
    %cst_15 = arith.constant 0.000000e+00 : f32
    %39 = vector.broadcast %cst_15 : f32 to vector<16x16xf32>
    %40 = arith.select %9, %38, %39 : vector<16x16xi1>, vector<16x16xf32>
    %41 = arith.addf %40, %29 : vector<16x16xf32>
    %c15_i32_16 = arith.constant 15 : i32
    %42 = tpu.dynamic_rotate %29 by %c15_i32_16 dim 1 : vector<16x16xf32>, i32 -> vector<16x16xf32>
    %cst_17 = arith.constant 0.000000e+00 : f32
    %43 = vector.broadcast %cst_17 : f32 to vector<16x16xf32>
    %44 = arith.select %7, %42, %43 : vector<16x16xi1>, vector<16x16xf32>
    %45 = arith.addf %41, %44 : vector<16x16xf32>
    %c1_i32_18 = arith.constant 1 : i32
    %46 = tpu.dynamic_rotate %37 by %c1_i32_18 dim 1 : vector<16x16xf32>, i32 -> vector<16x16xf32>
    %cst_19 = arith.constant 0.000000e+00 : f32
    %47 = vector.broadcast %cst_19 : f32 to vector<16x16xf32>
    %48 = arith.select %9, %46, %47 : vector<16x16xi1>, vector<16x16xf32>
    %49 = arith.addf %48, %37 : vector<16x16xf32>
    %c15_i32_20 = arith.constant 15 : i32
    %50 = tpu.dynamic_rotate %37 by %c15_i32_20 dim 1 : vector<16x16xf32>, i32 -> vector<16x16xf32>
    %cst_21 = arith.constant 0.000000e+00 : f32
    %51 = vector.broadcast %cst_21 : f32 to vector<16x16xf32>
    %52 = arith.select %7, %50, %51 : vector<16x16xi1>, vector<16x16xf32>
    %53 = arith.addf %49, %52 : vector<16x16xf32>
    %54 = arith.addf %45, %53 : vector<16x16xf32>
    %cst_22 = arith.constant 0.111111112 : f32
    %55 = vector.broadcast %cst_22 : f32 to vector<16x16xf32>
    %56 = arith.mulf %54, %55 : vector<16x16xf32>
    %c0_23 = arith.constant 0 : index
    %c0_24 = arith.constant 0 : index
    %c0_25 = arith.constant 0 : index
    %57 = vector.load %arg2[%c0_23, %c0_24, %c0_25] : memref<1x16x16xf32, #tpu.memory_space<vmem>>, vector<1x16x16xf32>
    %58 = vector.shape_cast %57 : vector<1x16x16xf32> to vector<16x16xf32>
    %59 = vector.shape_cast %56 : vector<16x16xf32> to vector<1x16x16xf32>
    tpu.vector_store %arg2[%c0_23, %c0_24, %c0_25], %59 {strides = array<i32>} : memref<1x16x16xf32, #tpu.memory_space<vmem>>, vector<1x16x16xf32>,
    return
  }
  func.func @transform_0(%arg0: i32) -> (i32, i32, i32) {
    %c0_i32 = arith.constant 0 : i32
    %c0_i32_0 = arith.constant 0 : i32
    %c0_i32_1 = arith.constant 0 : i32
    return %arg0, %c0_i32, %c0_i32_0 : i32, i32, i32
  }
  func.func @transform_1(%arg0: i32) -> (i32, i32, i32) {
    %c0_i32 = arith.constant 0 : i32
    %c0_i32_0 = arith.constant 0 : i32
    %c0_i32_1 = arith.constant 0 : i32
    return %arg0, %c0_i32, %c0_i32_0 : i32, i32, i32
  }
}

</mosaic_0001>

<llo_original>
// kernel: tpu_custom_call.1
$region0: #{tpu_custom_call.1}
  #allocation0 [shape = 'u32[]', space=smem, size = 0x4, offset = 0x4, fixed_abs, tag = 'smem constant byte address 0x4 - core index']
  #allocation1 [shape = 'u32[144,128]{1,0:T(1,128)}', space=vmem, size = 0x12000, scoped, tag = 'internal scratch']
  %s0 = inlined_call_operand.hbm [shape: f32[2,16,16], index: 0, kind: input, shape index: {}]
  %s1 = inlined_call_operand.hbm [shape: f32[2,16,16], index: 1, kind: output, shape index: {}]
  %s2 = sld [smem:[#allocation0]]
  $region41: #{tpu_custom_call.1} parent=0
    _
  %s4 = ssub.s32 1, %s2
  %s5 = scalar_select 0, %s4, %s2
  $region1: #{tpu_custom_call.1} parent=0
    #allocation2 [shape = 'u8[16384]{0}', space=vmem, size = 0x4000, scoped, tag = 'input window, operand 0']
    #allocation3 [shape = 's32[2]{0}', space=sflag, size = 0x8, scoped, tag = 'scoped memory for tpu_custom_call.1']
    #allocation4 [shape = 's32[2]{0}', space=sflag, size = 0x8, scoped, tag = 'scoped memory for tpu_custom_call.1']
    #allocation5 [shape = 'u8[16384]{0}', space=vmem, size = 0x4000, scoped, tag = 'output window, operand 0']
    %6 = vsyncpa [#allocation3], 0
    %s7 = scalar_lea.sflag [#allocation3], 1
    %8 = vsyncpa %s7, 0
    %9 = vsyncpa [#allocation4], 0
    %s10 = scalar_lea.sflag [#allocation4], 1
    %11 = vsyncpa %s10, 0
    loop: start=0, step=1, limit=4
    $region2: #{tpu_custom_call.1} parent=1 // loop_pre_header
      _
    $region3: #{tpu_custom_call.1} parent=1 // loop_header
      %s13 = sphi 0, %s17
      %p14 = scmp.ge.s32.totalorder %s13, 4
      %s23 = sphi 0, %s25
      %s26 = sphi 0, %s23
      %s27 = sphi 0, %s26
      %s43 = sphi 0, %s27
      %s49 = sphi 0, %s51
      %s52 = sphi 0, %s49
      %s53 = sphi 0, %s52
      %s69 = sphi 0, %s53
    $region4: #{tpu_custom_call.1} parent=1 // loop_header_branch
      %16 = sbr.rel (%p14) target = $region8
    $region5: #{tpu_custom_call.1} parent=1 // loop_body
      %s18 = ssub.s32 %s13, 1
      %s19 = ssub.s32 %s13, 2
      %s20 = sadd.s32 %s13, 1
      %s21 = ssub.s32 %s13, %s20
      %p22 = scmp.eq.s32.totalorder %s21, 0
      %s24 = sadd.s32 %s23, 1
      %s25 = scalar_select %p22, %s23, %s24
      %p28 = pneg %p22
      %p29 = scmp.eq.s32.totalorder %s13, 1
      %p30 = por %p28, %p29
      %p31 = scmp.ne.s32.totalorder %s23, %s26
      %p32 = scmp.eq.s32.totalorder %s13, 0
      %p33 = por %p31, %p32
      %p34 = scmp.ne.s32.totalorder %s23, %s26
      %p35 = scmp.eq.s32.totalorder %s18, 1
      %p36 = por %p34, %p35
      %p37 = scmp.ne.s32.totalorder %s26, %s27
      %p38 = scmp.eq.s32.totalorder %s18, 0
      %p39 = por %p37, %p38
      %p40 = scmp.ne.s32.totalorder %s26, %s27
      %p41 = scmp.eq.s32.totalorder %s19, 1
      %p42 = por %p40, %p41
      %p44 = scmp.ne.s32.totalorder %s27, %s43
      %p45 = scmp.eq.s32.totalorder %s19, 0
      %p46 = por %p44, %p45
      %s47 = ssub.s32 %s13, %s20
      %p48 = scmp.eq.s32.totalorder %s47, 0
      %s50 = sadd.s32 %s49, 1
      %s51 = scalar_select %p48, %s49, %s50
      %p54 = pneg %p48
      %p55 = scmp.eq.s32.totalorder %s13, 1
      %p56 = por %p54, %p55
      %p57 = scmp.ne.s32.totalorder %s49, %s52
      %p58 = scmp.eq.s32.totalorder %s13, 0
      %p59 = por %p57, %p58
      %p60 = scmp.ne.s32.totalorder %s49, %s52
      %p61 = scmp.eq.s32.totalorder %s18, 1
      %p62 = por %p60, %p61
      %p63 = scmp.ne.s32.totalorder %s52, %s53
      %p64 = scmp.eq.s32.totalorder %s18, 0
      %p65 = por %p63, %p64
      %p66 = scmp.ne.s32.totalorder %s52, %s53
      %p67 = scmp.eq.s32.totalorder %s19, 1
      %p68 = por %p66, %p67
      %p70 = scmp.ne.s32.totalorder %s53, %s69
      %p71 = scmp.eq.s32.totalorder %s19, 0
      %p72 = por %p70, %p71
      %p73 = scmp.le.s32.totalorder 1, %s13
      %p74 = scmp.lt.s32.totalorder %s13, 3
      %p75 = pnand %p73, %p74
      %p76 = pneg %p75
      // Predicated region
      $region9: #{tpu_custom_call.1} parent=5 // pred_check
        _
      $region10: #{tpu_custom_call.1} parent=5 // pred_check_branch
        %78 = sbr.rel (%p75) target = $region12
      $region11: #{tpu_custom_call.1} parent=5 // pred_region
        %s79 = ssub.s32 %s13, 1
      $region12: #{tpu_custom_call.1} parent=5 // pred_fallthru
        _
      %p80 = scmp.lt.s32.totalorder %s13, 2
      // Predicated region
      $region13: #{tpu_custom_call.1} parent=5 // pred_check
        %p81 = pneg %p80
      $region14: #{tpu_custom_call.1} parent=5 // pred_check_branch
        %83 = sbr.rel (%p81) target = $region16
      $region15: #{tpu_custom_call.1} parent=5 // pred_region
        // Predicated region
        $region17: #{tpu_custom_call.1} parent=15 // pred_check
          %p84 = pneg %p33
        $region18: #{tpu_custom_call.1} parent=15 // pred_check_branch
          %86 = sbr.rel (%p84) target = $region20
        $region19: #{tpu_custom_call.1} parent=15 // pred_region
          %s87 = sand.u32 %s23, 1
          %s88 = scalar_lea.sflag [#allocation3], %s87
          %s89 = sand.u32 %s23, 1
          %s90 = smul.addr %s89, 16
          %s91 = scalar_lea.vmem [#allocation2], %s90
          %s93 = ssub.s32 256, 256
          %94 = vsyncadd %s88, %s93
          %s95 = smul.addr %s13, 2
          %s96 = smul.addr %s95, 128
          %s97 = scalar_lea.hbm %s0, %s96
          %s98 = sshll.u32 %s91, 4
          %s99 = int_to_ptr.vmem [resolvable:$true] %s98
          %104 = dma.hbm_to_vmem [thread:$0]  %s97, 256, %s99, %s88, 128, 128, 8
        $region20: #{tpu_custom_call.1} parent=15 // pred_fallthru
          _
      $region16: #{tpu_custom_call.1} parent=5 // pred_fallthru
        _
      %p105 = scmp.le.s32.totalorder 1, %s13
      %p106 = scmp.lt.s32.totalorder %s13, 3
      %p107 = pnand %p105, %p106
      %p108 = pneg %p107
      // Predicated region
      $region21: #{tpu_custom_call.1} parent=5 // pred_check
        _
      $region22: #{tpu_custom_call.1} parent=5 // pred_check_branch
        %110 = sbr.rel (%p107) target = $region24
      $region23: #{tpu_custom_call.1} parent=5 // pred_region
        %s111 = ssub.s32 %s13, 1
        %s112 = sand.u32 %s26, 1
        %s113 = scalar_lea.sflag [#allocation3], %s112
        %s114 = sand.u32 %s26, 1
        %s115 = smul.addr %s114, 16
        %s116 = scalar_lea.vmem [#allocation2], %s115
        // Predicated region
        $region25: #{tpu_custom_call.1} parent=23 // pred_check
          %p117 = pneg %p39
        $region26: #{tpu_custom_call.1} parent=23 // pred_check_branch
          %119 = sbr.rel (%p117) target = $region28
        $region27: #{tpu_custom_call.1} parent=23 // pred_region
          %120 = dma.done %s113, 256
        $region28: #{tpu_custom_call.1} parent=23 // pred_fallthru
          _
        %s121 = sand.u32 %s26, 1
        %s122 = scalar_lea.sflag [#allocation3], %s121
        %s123 = sand.u32 %s26, 1
        %s124 = smul.addr %s123, 16
        %s125 = scalar_lea.vmem [#allocation2], %s124
        %p126 = pneg %p39
        %p127 = pneg %p36
        %p128 = pneg %p65
        %p129 = pneg %p62
        %s130 = sand.u32 %s52, 1
        %s131 = scalar_lea.sflag [#allocation4], %s130
        %s132 = sand.u32 %s52, 1
        %s133 = smul.addr %s132, 16
        %s134 = scalar_lea.vmem [#allocation5], %s133
        %v135 = vlaneseq
        %v136 = vshrl.u32 %v135, 7
        %v137 = vadd.s32 %v136, 8
        %v138 = vlaneseq
        %v139 = vand.u32 %v138, 127
        %vm140 = vcmp.lt.s32.totalorder %v136, 15
        %vm141 = vcmp.lt.s32.totalorder %v137, 15
        %vm142 = vcmp.gt.s32.totalorder %v136, 0
        %vm143 = vcmp.gt.s32.totalorder %v137, 0
        %vm144 = vcmp.lt.s32.totalorder %v139, 15
        %vm145 = vcmp.gt.s32.totalorder %v139, 0
        %v146 = vld [vmem:[%s116] sm:$0xff]
        %v147 = vld [vmem:[%s116 + $0x8] sm:$0xff]
        %v148 = vrot.slane %v146, 1
        %v149 = vrot.slane %v147, 1
        %vm150 = vcmp.lt.s32.totalorder %v136, 7
        %v151 = vsel %vm150, %v148, %v149
        %v152 = vsel %vm150, %v149, %v148
        %v153 = vsub.f32 %v151, %v146
        %v154 = vsub.f32 %v152, %v147
        %v155 = vand.u32 2147483647, %v153
        %v156 = vand.u32 2147483647, %v154
        %v157 = vsel %vm140, %v155, 0.0
        %v158 = vsel %vm141, %v156, 0.0
        %vm159 = vcmask 1047680
        %160 = vrot.lane.b32.xlu0 %v146, 16
        %v161 = vpop.permute.xlu0 %160
        %v162 = vsel %vm159, %v161, %v146
        %163 = vrot.lane.b32.xlu0 %v147, 16
        %v164 = vpop.permute.xlu0 %163
        %v165 = vsel %vm159, %v164, %v147
        %166 = vrot.lane.b32.xlu0 %v162, 16
        %v167 = vpop.permute.xlu0 %166
        %168 = vrot.lane.b32.xlu0 %v165, 16
        %v169 = vpop.permute.xlu0 %168
        %v170 = vsel %vm159, %v167, %v146
        %v171 = vsel %vm159, %v169, %v147
        %174 = vrot.lane.b32.xlu0 %v146, 1
        %v175 = vpop.permute.xlu0 %174
        %176 = vrot.lane.b32.xlu0 %v147, 1
        %v177 = vpop.permute.xlu0 %176
        %v180 = vsub.f32 %v170, %v175
        %v181 = vsub.f32 %v171, %v177
        %v182 = vand.u32 2147483647, %v180
        %v183 = vand.u32 2147483647, %v181
        %186 = vrot.lane.b32.xlu0 %v182, 127
        %v187 = vpop.permute.xlu0 %186
        %188 = vrot.lane.b32.xlu0 %v183, 127
        %v189 = vpop.permute.xlu0 %188
        %v192 = vsel %vm144, %v187, 0.0
        %v193 = vsel %vm144, %v189, 0.0
        %v194 = vrot.slane %v157, 7
        %v195 = vrot.slane %v158, 7
        %vm196 = vcmp.lt.s32.totalorder %v136, 1
        %v197 = vsel %vm196, %v194, %v195
        %v198 = vsel %vm196, %v195, %v194
        %v199 = vsel %vm142, %v198, 0.0
        %v200 = vsel %vm143, %v197, 0.0
        %v201 = vadd.f32 %v199, %v157
        %v202 = vadd.f32 %v200, %v158
        %v203 = vrot.slane %v157, 1
        %v204 = vrot.slane %v158, 1
        %v205 = vsel %vm150, %v203, %v204
        %v206 = vsel %vm150, %v204, %v203
        %v207 = vsel %vm140, %v205, 0.0
        %v208 = vsel %vm141, %v206, 0.0
        %v209 = vadd.f32 %v201, %v207
        %v210 = vadd.f32 %v202, %v208
        %v211 = vrot.slane %v192, 7
        %v212 = vrot.slane %v193, 7
        %v213 = vsel %vm196, %v211, %v212
        %v214 = vsel %vm196, %v212, %v211
        %v215 = vsel %vm142, %v214, 0.0
        %v216 = vsel %vm143, %v213, 0.0
        %v217 = vadd.f32 %v215, %v192
        %v218 = vadd.f32 %v216, %v193
        %v219 = vrot.slane %v192, 1
        %v220 = vrot.slane %v193, 1
        %v221 = vsel %vm150, %v219, %v220
        %v222 = vsel %vm150, %v220, %v219
        %v223 = vsel %vm140, %v221, 0.0
        %v224 = vsel %vm141, %v222, 0.0
        %v225 = vadd.f32 %v217, %v223
        %v226 = vadd.f32 %v218, %v224
        %227 = vrot.lane.b32.xlu0 %v209, 16
        %v228 = vpop.permute.xlu0 %227
        %v229 = vsel %vm159, %v228, %v209
        %230 = vrot.lane.b32.xlu0 %v210, 16
        %v231 = vpop.permute.xlu0 %230
        %v232 = vsel %vm159, %v231, %v210
        %233 = vrot.lane.b32.xlu0 %v229, 16
        %v234 = vpop.permute.xlu0 %233
        %235 = vrot.lane.b32.xlu0 %v232, 16
        %v236 = vpop.permute.xlu0 %235
        %v237 = vsel %vm159, %v234, %v209
        %v238 = vsel %vm159, %v236, %v210
        %241 = vrot.lane.b32.xlu0 %v237, 113
        %v242 = vpop.permute.xlu0 %241
        %243 = vrot.lane.b32.xlu0 %v238, 113
        %v244 = vpop.permute.xlu0 %243
        %v247 = vsel %vm145, %v242, 0.0
        %v248 = vsel %vm145, %v244, 0.0
        %v249 = vadd.f32 %v247, %v209
        %v250 = vadd.f32 %v248, %v210
        %251 = vrot.lane.b32.xlu0 %v237, 127
        %v252 = vpop.permute.xlu0 %251
        %253 = vrot.lane.b32.xlu0 %v238, 127
        %v254 = vpop.permute.xlu0 %253
        %v257 = vsel %vm144, %v252, 0.0
        %v258 = vsel %vm144, %v254, 0.0
        %v259 = vadd.f32 %v249, %v257
        %v260 = vadd.f32 %v250, %v258
        %261 = vrot.lane.b32.xlu0 %v225, 16
        %v262 = vpop.permute.xlu0 %261
        %v263 = vsel %vm159, %v262, %v225
        %264 = vrot.lane.b32.xlu0 %v226, 16
        %v265 = vpop.permute.xlu0 %264
        %v266 = vsel %vm159, %v265, %v226
        %267 = vrot.lane.b32.xlu0 %v263, 16
        %v268 = vpop.permute.xlu0 %267
        %269 = vrot.lane.b32.xlu0 %v266, 16
        %v270 = vpop.permute.xlu0 %269
        %v271 = vsel %vm159, %v268, %v225
        %v272 = vsel %vm159, %v270, %v226
        %275 = vrot.lane.b32.xlu0 %v271, 113
        %v276 = vpop.permute.xlu0 %275
        %277 = vrot.lane.b32.xlu0 %v272, 113
        %v278 = vpop.permute.xlu0 %277
        %v281 = vsel %vm145, %v276, 0.0
        %v282 = vsel %vm145, %v278, 0.0
        %v283 = vadd.f32 %v281, %v225
        %v284 = vadd.f32 %v282, %v226
        %285 = vrot.lane.b32.xlu0 %v271, 127
        %v286 = vpop.permute.xlu0 %285
        %287 = vrot.lane.b32.xlu0 %v272, 127
        %v288 = vpop.permute.xlu0 %287
        %v291 = vsel %vm144, %v286, 0.0
        %v292 = vsel %vm144, %v288, 0.0
        %v293 = vadd.f32 %v283, %v291
        %v294 = vadd.f32 %v284, %v292
        %v295 = vadd.f32 %v259, %v293
        %v296 = vadd.f32 %v260, %v294
        %v297 = vmul.f32 %v295, 0.11111111
        %v298 = vmul.f32 %v296, 0.11111111
        %vm299 = vcmask 130048
        %300 = vst.msk [vmem:[%s134] sm:$0xff] %vm299, %v297
        %301 = vst.msk [vmem:[%s134 + $0x8] sm:$0xff] %vm299, %v298
        %s302 = sand.u32 %s52, 1
        %s303 = scalar_lea.sflag [#allocation4], %s302
        %s304 = sand.u32 %s52, 1
        %s305 = smul.addr %s304, 16
        %s306 = scalar_lea.vmem [#allocation5], %s305
        // Predicated region
        $region29: #{tpu_custom_call.1} parent=23 // pred_check
          %p307 = pneg %p62
        $region30: #{tpu_custom_call.1} parent=23 // pred_check_branch
          %309 = sbr.rel (%p307) target = $region32
        $region31: #{tpu_custom_call.1} parent=23 // pred_region
          %s311 = ssub.s32 256, 256
          %312 = vsyncadd %s303, %s311
          %s313 = smul.addr %s18, 2
          %s314 = smul.addr %s313, 128
          %s315 = scalar_lea.hbm %s1, %s314
          %s316 = sshll.u32 %s306, 4
          %s317 = int_to_ptr.vmem [resolvable:$true] %s316
          %322 = dma.vmem_to_hbm [thread:$0]  %s317, 256, %s315, %s303, 128, 128, 8
        $region32: #{tpu_custom_call.1} parent=23 // pred_fallthru
          _
      $region24: #{tpu_custom_call.1} parent=5 // pred_fallthru
        _
      %p323 = scmp.le.s32.totalorder 2, %s13
      // Predicated region
      $region33: #{tpu_custom_call.1} parent=5 // pred_check
        %p324 = pneg %p323
      $region34: #{tpu_custom_call.1} parent=5 // pred_check_branch
        %326 = sbr.rel (%p324) target = $region36
      $region35: #{tpu_custom_call.1} parent=5 // pred_region
        %s327 = ssub.s32 %s13, 2
        // Predicated region
        $region37: #{tpu_custom_call.1} parent=35 // pred_check
          %p328 = pneg %p68
        $region38: #{tpu_custom_call.1} parent=35 // pred_check_branch
          %330 = sbr.rel (%p328) target = $region40
        $region39: #{tpu_custom_call.1} parent=35 // pred_region
          %s331 = sand.u32 %s53, 1
          %s332 = scalar_lea.sflag [#allocation4], %s331
          %s333 = sand.u32 %s53, 1
          %s334 = smul.addr %s333, 16
          %s335 = scalar_lea.vmem [#allocation5], %s334
          %336 = dma.done %s332, 256
        $region40: #{tpu_custom_call.1} parent=35 // pred_fallthru
          _
      $region36: #{tpu_custom_call.1} parent=5 // pred_fallthru
        _
    $region6: #{tpu_custom_call.1} parent=1 // loop_footer
      %s17 = sadd.s32 1, %s13
    $region7: #{tpu_custom_call.1} parent=1 // loop_footer_branch
      %12 = sbr.rel target = $region3
    $region8: #{tpu_custom_call.1} parent=1 // loop_exit
      _
    %337 = vsyncpa [#allocation3], 1
    %s338 = scalar_lea.sflag [#allocation3], 1
    %339 = vsyncpa %s338, 1
    %340 = vsyncpa [#allocation4], 1
    %s341 = scalar_lea.sflag [#allocation4], 1
    %342 = vsyncpa %s341, 1

</llo_original>
